<compile_context>
chip_gen: v6e
topology: v6e:2x2x1
jax: 0.10.0
libtpu: 0.0.40
codegen_flags: <defaults>
</compile_context>

<pallas_src>
import jax
import jax.numpy as jnp
from jax.experimental import pallas as pl
from jax.experimental.pallas import tpu as pltpu


def conv_pair_sum(x, w1, b1, w2, b2):
    """Computes conv2d(x, w1)+b1 + conv2d(x, w2)+b2 (valid, stride 1), NCHW/OIHW."""
    N, Cin, H, W = x.shape
    Cout, _, KH, KW = w1.shape
    OH, OW = H - KH + 1, W - KW + 1

    # Algebraic fusion of the two convolutions (done once, outside the kernel).
    w_sum = (w1.astype(jnp.float32) + w2.astype(jnp.float32)).reshape(-1)  # (Cout*Cin*KH*KW,)
    b_sum = (b1.astype(jnp.float32) + b2.astype(jnp.float32)).reshape(-1)  # (Cout,)

    def kernel(x_ref, w_ref, b_ref, o_ref):
        x_v = x_ref[...]  # (N, Cin, H, W) f32, single VMEM block

        rows = []
        for n in range(N):
            # Extract each shifted patch exactly once; reuse across Cout.
            patches = [
                [
                    [x_v[n, ci, kh:kh + OH, kw:kw + OW] for kw in range(KW)]
                    for kh in range(KH)
                ]
                for ci in range(Cin)
            ]
            for co in range(Cout):
                # Start the accumulator at the (fused) bias — saves a final add.
                acc = jnp.full((OH, OW), b_ref[co], dtype=jnp.float32)
                for ci in range(Cin):
                    for kh in range(KH):
                        for kw in range(KW):
                            idx = ((co * Cin + ci) * KH + kh) * KW + kw
                            acc = acc + patches[ci][kh][kw] * w_ref[idx]
                rows.append(acc)

        # Single combined store (one vreg worth of data), no per-channel writes.
        o_ref[...] = jnp.concatenate(rows, axis=0)  # (N*Cout*OH, OW)

    out2d = pl.pallas_call(
        kernel,
        out_shape=jax.ShapeDtypeStruct((N * Cout * OH, OW), jnp.float32),
        in_specs=[
            pl.BlockSpec(memory_space=pltpu.MemorySpace.VMEM),   # x
            pl.BlockSpec(memory_space=pltpu.MemorySpace.SMEM),   # fused weights (1-D)
            pl.BlockSpec(memory_space=pltpu.MemorySpace.SMEM),   # fused bias    (1-D)
        ],
        out_specs=pl.BlockSpec(memory_space=pltpu.MemorySpace.VMEM),
    )(x.astype(jnp.float32), w_sum, b_sum)

    # Layout plumbing back to NCHW happens in the wrapper (contiguous reshape).
    return out2d.reshape(N, Cout, OH, OW)


def _reference(x, w1, b1, w2, b2):
    # Pure-JAX reference using lax conv (NCHW / OIHW).
    dn = jax.lax.conv_dimension_numbers(x.shape, w1.shape,
                                        ("NCHW", "OIHW", "NCHW"))
    s = jax.lax.conv_general_dilated(x, w1, (1, 1), "VALID",
                                     dimension_numbers=dn)
    s = s + b1.reshape(1, -1, 1, 1)
    t = jax.lax.conv_general_dilated(x, w2, (1, 1), "VALID",
                                     dimension_numbers=dn)
    t = t + b2.reshape(1, -1, 1, 1)
    return s + t


if __name__ == "__main__":
    key = jax.random.PRNGKey(0)
    kx, kw1, kw2, kb1, kb2 = jax.random.split(key, 5)

    # Conv2d(2, 2, 3): weight OIHW (2,2,3,3), bias (2,)  — two independent layers.
    w1 = jax.random.normal(kw1, (2, 2, 3, 3), jnp.float32)
    w2 = jax.random.normal(kw2, (2, 2, 3, 3), jnp.float32)
    b1 = jax.random.normal(kb1, (2,), jnp.float32)
    b2 = jax.random.normal(kb2, (2,), jnp.float32)

    # Input matching the module's x1 = torch.randn(1, 2, 4, 4)
    x = jax.random.normal(kx, (1, 2, 4, 4), jnp.float32)

    out = conv_pair_sum(x, w1, b1, w2, b2)
    out = jax.block_until_ready(out)

    ref = _reference(x, w1, b1, w2, b2)
    assert out.shape == (1, 2, 2, 2)
    assert jnp.allclose(out, ref, rtol=1e-5, atol=1e-5)

    print("KERNEL_OK")
</pallas_src>

<mosaic_0001>
module attributes {stable_mosaic.version = 11 : i64} {
  func.func @kernel(%arg0: memref<1x2x4x4xf32, #tpu.memory_space<vmem>>, %arg1: memref<36xf32, #tpu.memory_space<smem>>, %arg2: memref<2xf32, #tpu.memory_space<smem>>, %arg3: memref<4x2xf32, #tpu.memory_space<vmem>>) attributes {dimension_semantics = [], scalar_prefetch = 0 : i64, scratch_operands = 0 : i64, tpu.core_type = #tpu.core_type<tc>} {
    %c0 = arith.constant 0 : index
    %c0_0 = arith.constant 0 : index
    %c0_1 = arith.constant 0 : index
    %c0_2 = arith.constant 0 : index
    %0 = vector.load %arg0[%c0, %c0_0, %c0_1, %c0_2] : memref<1x2x4x4xf32, #tpu.memory_space<vmem>>, vector<1x2x4x4xf32>
    %1 = vector.extract_strided_slice %0 {offsets = [0, 0, 0, 0], sizes = [1, 1, 2, 2], strides = [1, 1, 1, 1]} : vector<1x2x4x4xf32> to vector<1x1x2x2xf32>
    %2 = vector.shape_cast %1 : vector<1x1x2x2xf32> to vector<2x2xf32>
    %3 = vector.extract_strided_slice %0 {offsets = [0, 0, 0, 1], sizes = [1, 1, 2, 2], strides = [1, 1, 1, 1]} : vector<1x2x4x4xf32> to vector<1x1x2x2xf32>
    %4 = vector.shape_cast %3 : vector<1x1x2x2xf32> to vector<2x2xf32>
    %5 = vector.extract_strided_slice %0 {offsets = [0, 0, 0, 2], sizes = [1, 1, 2, 2], strides = [1, 1, 1, 1]} : vector<1x2x4x4xf32> to vector<1x1x2x2xf32>
    %6 = vector.shape_cast %5 : vector<1x1x2x2xf32> to vector<2x2xf32>
    %7 = vector.extract_strided_slice %0 {offsets = [0, 0, 1, 0], sizes = [1, 1, 2, 2], strides = [1, 1, 1, 1]} : vector<1x2x4x4xf32> to vector<1x1x2x2xf32>
    %8 = vector.shape_cast %7 : vector<1x1x2x2xf32> to vector<2x2xf32>
    %9 = vector.extract_strided_slice %0 {offsets = [0, 0, 1, 1], sizes = [1, 1, 2, 2], strides = [1, 1, 1, 1]} : vector<1x2x4x4xf32> to vector<1x1x2x2xf32>
    %10 = vector.shape_cast %9 : vector<1x1x2x2xf32> to vector<2x2xf32>
    %11 = vector.extract_strided_slice %0 {offsets = [0, 0, 1, 2], sizes = [1, 1, 2, 2], strides = [1, 1, 1, 1]} : vector<1x2x4x4xf32> to vector<1x1x2x2xf32>
    %12 = vector.shape_cast %11 : vector<1x1x2x2xf32> to vector<2x2xf32>
    %13 = vector.extract_strided_slice %0 {offsets = [0, 0, 2, 0], sizes = [1, 1, 2, 2], strides = [1, 1, 1, 1]} : vector<1x2x4x4xf32> to vector<1x1x2x2xf32>
    %14 = vector.shape_cast %13 : vector<1x1x2x2xf32> to vector<2x2xf32>
    %15 = vector.extract_strided_slice %0 {offsets = [0, 0, 2, 1], sizes = [1, 1, 2, 2], strides = [1, 1, 1, 1]} : vector<1x2x4x4xf32> to vector<1x1x2x2xf32>
    %16 = vector.shape_cast %15 : vector<1x1x2x2xf32> to vector<2x2xf32>
    %17 = vector.extract_strided_slice %0 {offsets = [0, 0, 2, 2], sizes = [1, 1, 2, 2], strides = [1, 1, 1, 1]} : vector<1x2x4x4xf32> to vector<1x1x2x2xf32>
    %18 = vector.shape_cast %17 : vector<1x1x2x2xf32> to vector<2x2xf32>
    %19 = vector.extract_strided_slice %0 {offsets = [0, 1, 0, 0], sizes = [1, 1, 2, 2], strides = [1, 1, 1, 1]} : vector<1x2x4x4xf32> to vector<1x1x2x2xf32>
    %20 = vector.shape_cast %19 : vector<1x1x2x2xf32> to vector<2x2xf32>
    %21 = vector.extract_strided_slice %0 {offsets = [0, 1, 0, 1], sizes = [1, 1, 2, 2], strides = [1, 1, 1, 1]} : vector<1x2x4x4xf32> to vector<1x1x2x2xf32>
    %22 = vector.shape_cast %21 : vector<1x1x2x2xf32> to vector<2x2xf32>
    %23 = vector.extract_strided_slice %0 {offsets = [0, 1, 0, 2], sizes = [1, 1, 2, 2], strides = [1, 1, 1, 1]} : vector<1x2x4x4xf32> to vector<1x1x2x2xf32>
    %24 = vector.shape_cast %23 : vector<1x1x2x2xf32> to vector<2x2xf32>
    %25 = vector.extract_strided_slice %0 {offsets = [0, 1, 1, 0], sizes = [1, 1, 2, 2], strides = [1, 1, 1, 1]} : vector<1x2x4x4xf32> to vector<1x1x2x2xf32>
    %26 = vector.shape_cast %25 : vector<1x1x2x2xf32> to vector<2x2xf32>
    %27 = vector.extract_strided_slice %0 {offsets = [0, 1, 1, 1], sizes = [1, 1, 2, 2], strides = [1, 1, 1, 1]} : vector<1x2x4x4xf32> to vector<1x1x2x2xf32>
    %28 = vector.shape_cast %27 : vector<1x1x2x2xf32> to vector<2x2xf32>
    %29 = vector.extract_strided_slice %0 {offsets = [0, 1, 1, 2], sizes = [1, 1, 2, 2], strides = [1, 1, 1, 1]} : vector<1x2x4x4xf32> to vector<1x1x2x2xf32>
    %30 = vector.shape_cast %29 : vector<1x1x2x2xf32> to vector<2x2xf32>
    %31 = vector.extract_strided_slice %0 {offsets = [0, 1, 2, 0], sizes = [1, 1, 2, 2], strides = [1, 1, 1, 1]} : vector<1x2x4x4xf32> to vector<1x1x2x2xf32>
    %32 = vector.shape_cast %31 : vector<1x1x2x2xf32> to vector<2x2xf32>
    %33 = vector.extract_strided_slice %0 {offsets = [0, 1, 2, 1], sizes = [1, 1, 2, 2], strides = [1, 1, 1, 1]} : vector<1x2x4x4xf32> to vector<1x1x2x2xf32>
    %34 = vector.shape_cast %33 : vector<1x1x2x2xf32> to vector<2x2xf32>
    %35 = vector.extract_strided_slice %0 {offsets = [0, 1, 2, 2], sizes = [1, 1, 2, 2], strides = [1, 1, 1, 1]} : vector<1x2x4x4xf32> to vector<1x1x2x2xf32>
    %36 = vector.shape_cast %35 : vector<1x1x2x2xf32> to vector<2x2xf32>
    %c0_3 = arith.constant 0 : index
    %37 = memref.load %arg2[%c0_3] : memref<2xf32, #tpu.memory_space<smem>>
    %38 = vector.broadcast %37 : f32 to vector<2x2xf32>
    %c0_4 = arith.constant 0 : index
    %39 = memref.load %arg1[%c0_4] : memref<36xf32, #tpu.memory_space<smem>>
    %40 = vector.broadcast %39 : f32 to vector<2x2xf32>
    %41 = arith.mulf %2, %40 : vector<2x2xf32>
    %42 = arith.addf %38, %41 : vector<2x2xf32>
    %c1 = arith.constant 1 : index
    %43 = memref.load %arg1[%c1] : memref<36xf32, #tpu.memory_space<smem>>
    %44 = vector.broadcast %43 : f32 to vector<2x2xf32>
    %45 = arith.mulf %4, %44 : vector<2x2xf32>
    %46 = arith.addf %42, %45 : vector<2x2xf32>
    %c2 = arith.constant 2 : index
    %47 = memref.load %arg1[%c2] : memref<36xf32, #tpu.memory_space<smem>>
    %48 = vector.broadcast %47 : f32 to vector<2x2xf32>
    %49 = arith.mulf %6, %48 : vector<2x2xf32>
    %50 = arith.addf %46, %49 : vector<2x2xf32>
    %c3 = arith.constant 3 : index
    %51 = memref.load %arg1[%c3] : memref<36xf32, #tpu.memory_space<smem>>
    %52 = vector.broadcast %51 : f32 to vector<2x2xf32>
    %53 = arith.mulf %8, %52 : vector<2x2xf32>
    %54 = arith.addf %50, %53 : vector<2x2xf32>
    %c4 = arith.constant 4 : index
    %55 = memref.load %arg1[%c4] : memref<36xf32, #tpu.memory_space<smem>>
    %56 = vector.broadcast %55 : f32 to vector<2x2xf32>
    %57 = arith.mulf %10, %56 : vector<2x2xf32>
    %58 = arith.addf %54, %57 : vector<2x2xf32>
    %c5 = arith.constant 5 : index
    %59 = memref.load %arg1[%c5] : memref<36xf32, #tpu.memory_space<smem>>
    %60 = vector.broadcast %59 : f32 to vector<2x2xf32>
    %61 = arith.mulf %12, %60 : vector<2x2xf32>
    %62 = arith.addf %58, %61 : vector<2x2xf32>
    %c6 = arith.constant 6 : index
    %63 = memref.load %arg1[%c6] : memref<36xf32, #tpu.memory_space<smem>>
    %64 = vector.broadcast %63 : f32 to vector<2x2xf32>
    %65 = arith.mulf %14, %64 : vector<2x2xf32>
    %66 = arith.addf %62, %65 : vector<2x2xf32>
    %c7 = arith.constant 7 : index
    %67 = memref.load %arg1[%c7] : memref<36xf32, #tpu.memory_space<smem>>
    %68 = vector.broadcast %67 : f32 to vector<2x2xf32>
    %69 = arith.mulf %16, %68 : vector<2x2xf32>
    %70 = arith.addf %66, %69 : vector<2x2xf32>
    %c8 = arith.constant 8 : index
    %71 = memref.load %arg1[%c8] : memref<36xf32, #tpu.memory_space<smem>>
    %72 = vector.broadcast %71 : f32 to vector<2x2xf32>
    %73 = arith.mulf %18, %72 : vector<2x2xf32>
    %74 = arith.addf %70, %73 : vector<2x2xf32>
    %c9 = arith.constant 9 : index
    %75 = memref.load %arg1[%c9] : memref<36xf32, #tpu.memory_space<smem>>
    %76 = vector.broadcast %75 : f32 to vector<2x2xf32>
    %77 = arith.mulf %20, %76 : vector<2x2xf32>
    %78 = arith.addf %74, %77 : vector<2x2xf32>
    %c10 = arith.constant 10 : index
    %79 = memref.load %arg1[%c10] : memref<36xf32, #tpu.memory_space<smem>>
    %80 = vector.broadcast %79 : f32 to vector<2x2xf32>
    %81 = arith.mulf %22, %80 : vector<2x2xf32>
    %82 = arith.addf %78, %81 : vector<2x2xf32>
    %c11 = arith.constant 11 : index
    %83 = memref.load %arg1[%c11] : memref<36xf32, #tpu.memory_space<smem>>
    %84 = vector.broadcast %83 : f32 to vector<2x2xf32>
    %85 = arith.mulf %24, %84 : vector<2x2xf32>
    %86 = arith.addf %82, %85 : vector<2x2xf32>
    %c12 = arith.constant 12 : index
    %87 = memref.load %arg1[%c12] : memref<36xf32, #tpu.memory_space<smem>>
    %88 = vector.broadcast %87 : f32 to vector<2x2xf32>
    %89 = arith.mulf %26, %88 : vector<2x2xf32>
    %90 = arith.addf %86, %89 : vector<2x2xf32>
    %c13 = arith.constant 13 : index
    %91 = memref.load %arg1[%c13] : memref<36xf32, #tpu.memory_space<smem>>
    %92 = vector.broadcast %91 : f32 to vector<2x2xf32>
    %93 = arith.mulf %28, %92 : vector<2x2xf32>
    %94 = arith.addf %90, %93 : vector<2x2xf32>
    %c14 = arith.constant 14 : index
    %95 = memref.load %arg1[%c14] : memref<36xf32, #tpu.memory_space<smem>>
    %96 = vector.broadcast %95 : f32 to vector<2x2xf32>
    %97 = arith.mulf %30, %96 : vector<2x2xf32>
    %98 = arith.addf %94, %97 : vector<2x2xf32>
    %c15 = arith.constant 15 : index
    %99 = memref.load %arg1[%c15] : memref<36xf32, #tpu.memory_space<smem>>
    %100 = vector.broadcast %99 : f32 to vector<2x2xf32>
    %101 = arith.mulf %32, %100 : vector<2x2xf32>
    %102 = arith.addf %98, %101 : vector<2x2xf32>
    %c16 = arith.constant 16 : index
    %103 = memref.load %arg1[%c16] : memref<36xf32, #tpu.memory_space<smem>>
    %104 = vector.broadcast %103 : f32 to vector<2x2xf32>
    %105 = arith.mulf %34, %104 : vector<2x2xf32>
    %106 = arith.addf %102, %105 : vector<2x2xf32>
    %c17 = arith.constant 17 : index
    %107 = memref.load %arg1[%c17] : memref<36xf32, #tpu.memory_space<smem>>
    %108 = vector.broadcast %107 : f32 to vector<2x2xf32>
    %109 = arith.mulf %36, %108 : vector<2x2xf32>
    %110 = arith.addf %106, %109 : vector<2x2xf32>
    %c1_5 = arith.constant 1 : index
    %111 = memref.load %arg2[%c1_5] : memref<2xf32, #tpu.memory_space<smem>>
    %112 = vector.broadcast %111 : f32 to vector<2x2xf32>
    %c18 = arith.constant 18 : index
    %113 = memref.load %arg1[%c18] : memref<36xf32, #tpu.memory_space<smem>>
    %114 = vector.broadcast %113 : f32 to vector<2x2xf32>
    %115 = arith.mulf %2, %114 : vector<2x2xf32>
    %116 = arith.addf %112, %115 : vector<2x2xf32>
    %c19 = arith.constant 19 : index
    %117 = memref.load %arg1[%c19] : memref<36xf32, #tpu.memory_space<smem>>
    %118 = vector.broadcast %117 : f32 to vector<2x2xf32>
    %119 = arith.mulf %4, %118 : vector<2x2xf32>
    %120 = arith.addf %116, %119 : vector<2x2xf32>
    %c20 = arith.constant 20 : index
    %121 = memref.load %arg1[%c20] : memref<36xf32, #tpu.memory_space<smem>>
    %122 = vector.broadcast %121 : f32 to vector<2x2xf32>
    %123 = arith.mulf %6, %122 : vector<2x2xf32>
    %124 = arith.addf %120, %123 : vector<2x2xf32>
    %c21 = arith.constant 21 : index
    %125 = memref.load %arg1[%c21] : memref<36xf32, #tpu.memory_space<smem>>
    %126 = vector.broadcast %125 : f32 to vector<2x2xf32>
    %127 = arith.mulf %8, %126 : vector<2x2xf32>
    %128 = arith.addf %124, %127 : vector<2x2xf32>
    %c22 = arith.constant 22 : index
    %129 = memref.load %arg1[%c22] : memref<36xf32, #tpu.memory_space<smem>>
    %130 = vector.broadcast %129 : f32 to vector<2x2xf32>
    %131 = arith.mulf %10, %130 : vector<2x2xf32>
    %132 = arith.addf %128, %131 : vector<2x2xf32>
    %c23 = arith.constant 23 : index
    %133 = memref.load %arg1[%c23] : memref<36xf32, #tpu.memory_space<smem>>
    %134 = vector.broadcast %133 : f32 to vector<2x2xf32>
    %135 = arith.mulf %12, %134 : vector<2x2xf32>
    %136 = arith.addf %132, %135 : vector<2x2xf32>
    %c24 = arith.constant 24 : index
    %137 = memref.load %arg1[%c24] : memref<36xf32, #tpu.memory_space<smem>>
    %138 = vector.broadcast %137 : f32 to vector<2x2xf32>
    %139 = arith.mulf %14, %138 : vector<2x2xf32>
    %140 = arith.addf %136, %139 : vector<2x2xf32>
    %c25 = arith.constant 25 : index
    %141 = memref.load %arg1[%c25] : memref<36xf32, #tpu.memory_space<smem>>
    %142 = vector.broadcast %141 : f32 to vector<2x2xf32>
    %143 = arith.mulf %16, %142 : vector<2x2xf32>
    %144 = arith.addf %140, %143 : vector<2x2xf32>
    %c26 = arith.constant 26 : index
    %145 = memref.load %arg1[%c26] : memref<36xf32, #tpu.memory_space<smem>>
    %146 = vector.broadcast %145 : f32 to vector<2x2xf32>
    %147 = arith.mulf %18, %146 : vector<2x2xf32>
    %148 = arith.addf %144, %147 : vector<2x2xf32>
    %c27 = arith.constant 27 : index
    %149 = memref.load %arg1[%c27] : memref<36xf32, #tpu.memory_space<smem>>
    %150 = vector.broadcast %149 : f32 to vector<2x2xf32>
    %151 = arith.mulf %20, %150 : vector<2x2xf32>
    %152 = arith.addf %148, %151 : vector<2x2xf32>
    %c28 = arith.constant 28 : index
    %153 = memref.load %arg1[%c28] : memref<36xf32, #tpu.memory_space<smem>>
    %154 = vector.broadcast %153 : f32 to vector<2x2xf32>
    %155 = arith.mulf %22, %154 : vector<2x2xf32>
    %156 = arith.addf %152, %155 : vector<2x2xf32>
    %c29 = arith.constant 29 : index
    %157 = memref.load %arg1[%c29] : memref<36xf32, #tpu.memory_space<smem>>
    %158 = vector.broadcast %157 : f32 to vector<2x2xf32>
    %159 = arith.mulf %24, %158 : vector<2x2xf32>
    %160 = arith.addf %156, %159 : vector<2x2xf32>
    %c30 = arith.constant 30 : index
    %161 = memref.load %arg1[%c30] : memref<36xf32, #tpu.memory_space<smem>>
    %162 = vector.broadcast %161 : f32 to vector<2x2xf32>
    %163 = arith.mulf %26, %162 : vector<2x2xf32>
    %164 = arith.addf %160, %163 : vector<2x2xf32>
    %c31 = arith.constant 31 : index
    %165 = memref.load %arg1[%c31] : memref<36xf32, #tpu.memory_space<smem>>
    %166 = vector.broadcast %165 : f32 to vector<2x2xf32>
    %167 = arith.mulf %28, %166 : vector<2x2xf32>
    %168 = arith.addf %164, %167 : vector<2x2xf32>
    %c32 = arith.constant 32 : index
    %169 = memref.load %arg1[%c32] : memref<36xf32, #tpu.memory_space<smem>>
    %170 = vector.broadcast %169 : f32 to vector<2x2xf32>
    %171 = arith.mulf %30, %170 : vector<2x2xf32>
    %172 = arith.addf %168, %171 : vector<2x2xf32>
    %c33 = arith.constant 33 : index
    %173 = memref.load %arg1[%c33] : memref<36xf32, #tpu.memory_space<smem>>
    %174 = vector.broadcast %173 : f32 to vector<2x2xf32>
    %175 = arith.mulf %32, %174 : vector<2x2xf32>
    %176 = arith.addf %172, %175 : vector<2x2xf32>
    %c34 = arith.constant 34 : index
    %177 = memref.load %arg1[%c34] : memref<36xf32, #tpu.memory_space<smem>>
    %178 = vector.broadcast %177 : f32 to vector<2x2xf32>
    %179 = arith.mulf %34, %178 : vector<2x2xf32>
    %180 = arith.addf %176, %179 : vector<2x2xf32>
    %c35 = arith.constant 35 : index
    %181 = memref.load %arg1[%c35] : memref<36xf32, #tpu.memory_space<smem>>
    %182 = vector.broadcast %181 : f32 to vector<2x2xf32>
    %183 = arith.mulf %36, %182 : vector<2x2xf32>
    %184 = arith.addf %180, %183 : vector<2x2xf32>
    %185 = tpu.concatenate %110, %184 in 0 : vector<2x2xf32>, vector<2x2xf32> -> vector<4x2xf32>
    %c0_6 = arith.constant 0 : index
    %c0_7 = arith.constant 0 : index
    %186 = vector.load %arg3[%c0_6, %c0_7] : memref<4x2xf32, #tpu.memory_space<vmem>>, vector<4x2xf32>
    tpu.vector_store %arg3[%c0_6, %c0_7], %185 {strides = array<i32>} : memref<4x2xf32, #tpu.memory_space<vmem>>, vector<4x2xf32>,
    return
  }
}

</mosaic_0001>

<llo_original>
// kernel: tpu_custom_call.1
$region0: #{tpu_custom_call.1}
  #allocation0 [shape = 'u32[]', space=smem, size = 0x4, offset = 0x4, fixed_abs, tag = 'smem constant byte address 0x4 - core index']
  #allocation1 [shape = 'u32[144,128]{1,0:T(1,128)}', space=vmem, size = 0x12000, scoped, tag = 'internal scratch']
  %s0 = inlined_call_operand.hbm [shape: f32[1,2,4,4], index: 0, kind: input, shape index: {}]
  %s1 = inlined_call_operand.vmem [shape: f32[36], index: 1, kind: input, shape index: {}]
  %s2 = inlined_call_operand.vmem [shape: f32[2], index: 2, kind: input, shape index: {}]
  %s3 = inlined_call_operand.vmem [shape: f32[4,2], index: 3, kind: output, shape index: {}]
  %s4 = sld [smem:[#allocation0]]
  $region34: #{tpu_custom_call.1} parent=0
    _
  %s6 = ssub.s32 1, %s4
  %s7 = scalar_select 0, %s6, %s4
  $region1: #{tpu_custom_call.1} parent=0
    #allocation2 [shape = 'u8[4096]{0}', space=vmem, size = 0x1000, scoped, tag = 'input window, operand 0, single buffered']
    #allocation3 [shape = 's32[1]{0}', space=sflag, size = 0x4, scoped, tag = 'scoped memory for tpu_custom_call.1']
    #allocation4 [shape = 's32[1]{0}', space=sflag, size = 0x4, scoped, tag = 'scoped memory for tpu_custom_call.1']
    #allocation5 [shape = 'u8[512]{0}', space=smem, size = 0x200, scoped, tag = 'input window, operand 1, single buffered']
    #allocation6 [shape = 'u8[512]{0}', space=smem, size = 0x200, scoped, tag = 'input window, operand 2, single buffered']
    #allocation7 [shape = 's32[1]{0}', space=sflag, size = 0x4, scoped, tag = 'scoped memory for tpu_custom_call.1']
    %8 = vsyncpa [#allocation3], 0
    %9 = vsyncpa [#allocation4], 0
    %10 = vsyncpa [#allocation7], 0
    // Predicated region
    $region2: #{tpu_custom_call.1} parent=1 // pred_check
      _
    $region3: #{tpu_custom_call.1} parent=1 // pred_check_branch
      %12 = sbr.rel (0) target = $region5
    $region4: #{tpu_custom_call.1} parent=1 // pred_region
      %s14 = ssub.s32 128, 128
      %15 = vsyncadd [#allocation3], %s14
      %s16 = sshll.u32 [#allocation2], 4
      %s17 = int_to_ptr.vmem [resolvable:$true] %s16
      %22 = dma.hbm_to_vmem [thread:$0]  %s0, 128, %s17, [#allocation3], 64, 64, 4
    $region5: #{tpu_custom_call.1} parent=1 // pred_fallthru
      _
    // Predicated region
    $region6: #{tpu_custom_call.1} parent=1 // pred_check
      _
    $region7: #{tpu_custom_call.1} parent=1 // pred_check_branch
      %24 = sbr.rel (0) target = $region9
    $region8: #{tpu_custom_call.1} parent=1 // pred_region
      %s26 = ssub.s32 16, 16
      %27 = vsyncadd [#allocation4], %s26
      %s29 = sshll.u32 %s1, 4
      %s30 = int_to_ptr.vmem [resolvable:$true] %s29
      %32 = dma.vmem_to_smem %s30, 16, [#allocation5], [#allocation4]
    $region9: #{tpu_custom_call.1} parent=1 // pred_fallthru
      _
    // Predicated region
    $region10: #{tpu_custom_call.1} parent=1 // pred_check
      _
    $region11: #{tpu_custom_call.1} parent=1 // pred_check_branch
      %34 = sbr.rel (0) target = $region13
    $region12: #{tpu_custom_call.1} parent=1 // pred_region
      %s36 = ssub.s32 16, 16
      %37 = vsyncadd [#allocation7], %s36
      %s39 = sshll.u32 %s2, 4
      %s40 = int_to_ptr.vmem [resolvable:$true] %s39
      %42 = dma.vmem_to_smem %s40, 16, [#allocation6], [#allocation7]
    $region13: #{tpu_custom_call.1} parent=1 // pred_fallthru
      _
    // Predicated region
    $region14: #{tpu_custom_call.1} parent=1 // pred_check
      _
    $region15: #{tpu_custom_call.1} parent=1 // pred_check_branch
      %44 = sbr.rel (0) target = $region17
    $region16: #{tpu_custom_call.1} parent=1 // pred_region
      %45 = dma.done [#allocation3], 128
    $region17: #{tpu_custom_call.1} parent=1 // pred_fallthru
      _
    // Predicated region
    $region18: #{tpu_custom_call.1} parent=1 // pred_check
      _
    $region19: #{tpu_custom_call.1} parent=1 // pred_check_branch
      %47 = sbr.rel (0) target = $region21
    $region20: #{tpu_custom_call.1} parent=1 // pred_region
      %48 = dma.done [#allocation4], 16
    $region21: #{tpu_custom_call.1} parent=1 // pred_fallthru
      _
    // Predicated region
    $region22: #{tpu_custom_call.1} parent=1 // pred_check
      _
    $region23: #{tpu_custom_call.1} parent=1 // pred_check_branch
      %50 = sbr.rel (0) target = $region25
    $region24: #{tpu_custom_call.1} parent=1 // pred_region
      %51 = dma.done [#allocation7], 16
    $region25: #{tpu_custom_call.1} parent=1 // pred_fallthru
      _
    %52 = sfence
    %v53 = vld [vmem:[#allocation2] sm:$0xf]
    %v54 = vld [vmem:[#allocation2 + $0x4] sm:$0xf]
    %s55 = sld [smem:[#allocation6]]
    %v56 = vstv %s55
    %s57 = sld [smem:[#allocation5]]
    %v58 = vstv %s57
    %v59 = vmul.f32 %v53, %v58
    %v60 = vadd.f32 %v56, %v59
    %s61 = sld [smem:[#allocation5 + $0x1]]
    %v62 = vstv %s61
    %v63 = vmul.f32 %v53, %v62
    %65 = vrot.lane.b32.xlu0 %v63, 127
    %v66 = vpop.permute.xlu0 %65
    %v68 = vadd.f32 %v60, %v66
    %s69 = sld [smem:[#allocation5 + $0x2]]
    %v70 = vstv %s69
    %v71 = vmul.f32 %v53, %v70
    %73 = vrot.lane.b32.xlu0 %v71, 126
    %v74 = vpop.permute.xlu0 %73
    %v76 = vadd.f32 %v68, %v74
    %s77 = sld [smem:[#allocation5 + $0x3]]
    %v78 = vstv %s77
    %v79 = vmul.f32 %v53, %v78
    %v81 = vrot.slane %v79, 1
    %v83 = vadd.f32 %v76, %v81
    %s84 = sld [smem:[#allocation5 + $0x4]]
    %v85 = vstv %s84
    %v86 = vmul.f32 %v53, %v85
    %v88 = vrot.slane %v86, 1
    %89 = vrot.lane.b32.xlu0 %v88, 127
    %v90 = vpop.permute.xlu0 %89
    %v92 = vadd.f32 %v83, %v90
    %s93 = sld [smem:[#allocation5 + $0x5]]
    %v94 = vstv %s93
    %v95 = vmul.f32 %v53, %v94
    %v97 = vrot.slane %v95, 1
    %98 = vrot.lane.b32.xlu0 %v97, 126
    %v99 = vpop.permute.xlu0 %98
    %v101 = vadd.f32 %v92, %v99
    %s102 = sld [smem:[#allocation5 + $0x6]]
    %v103 = vstv %s102
    %v104 = vmul.f32 %v53, %v103
    %v106 = vrot.slane %v104, 2
    %v108 = vadd.f32 %v101, %v106
    %s109 = sld [smem:[#allocation5 + $0x7]]
    %v110 = vstv %s109
    %v111 = vmul.f32 %v53, %v110
    %v113 = vrot.slane %v111, 2
    %114 = vrot.lane.b32.xlu0 %v113, 127
    %v115 = vpop.permute.xlu0 %114
    %v117 = vadd.f32 %v108, %v115
    %s118 = sld [smem:[#allocation5 + $0x8]]
    %v119 = vstv %s118
    %v120 = vmul.f32 %v53, %v119
    %v122 = vrot.slane %v120, 2
    %123 = vrot.lane.b32.xlu0 %v122, 126
    %v124 = vpop.permute.xlu0 %123
    %v126 = vadd.f32 %v117, %v124
    %s127 = sld [smem:[#allocation5 + $0x9]]
    %v128 = vstv %s127
    %v129 = vmul.f32 %v54, %v128
    %v130 = vadd.f32 %v126, %v129
    %s131 = sld [smem:[#allocation5 + $0xa]]
    %v132 = vstv %s131
    %v133 = vmul.f32 %v54, %v132
    %135 = vrot.lane.b32.xlu0 %v133, 127
    %v136 = vpop.permute.xlu0 %135
    %v138 = vadd.f32 %v130, %v136
    %s139 = sld [smem:[#allocation5 + $0xb]]
    %v140 = vstv %s139
    %v141 = vmul.f32 %v54, %v140
    %143 = vrot.lane.b32.xlu0 %v141, 126
    %v144 = vpop.permute.xlu0 %143
    %v146 = vadd.f32 %v138, %v144
    %s147 = sld [smem:[#allocation5 + $0xc]]
    %v148 = vstv %s147
    %v149 = vmul.f32 %v54, %v148
    %v151 = vrot.slane %v149, 1
    %v153 = vadd.f32 %v146, %v151
    %s154 = sld [smem:[#allocation5 + $0xd]]
    %v155 = vstv %s154
    %v156 = vmul.f32 %v54, %v155
    %v158 = vrot.slane %v156, 1
    %159 = vrot.lane.b32.xlu0 %v158, 127
    %v160 = vpop.permute.xlu0 %159
    %v162 = vadd.f32 %v153, %v160
    %s163 = sld [smem:[#allocation5 + $0xe]]
    %v164 = vstv %s163
    %v165 = vmul.f32 %v54, %v164
    %v167 = vrot.slane %v165, 1
    %168 = vrot.lane.b32.xlu0 %v167, 126
    %v169 = vpop.permute.xlu0 %168
    %v171 = vadd.f32 %v162, %v169
    %s172 = sld [smem:[#allocation5 + $0xf]]
    %v173 = vstv %s172
    %v174 = vmul.f32 %v54, %v173
    %v176 = vrot.slane %v174, 2
    %v178 = vadd.f32 %v171, %v176
    %s179 = sld [smem:[#allocation5 + $0x10]]
    %v180 = vstv %s179
    %v181 = vmul.f32 %v54, %v180
    %v183 = vrot.slane %v181, 2
    %184 = vrot.lane.b32.xlu0 %v183, 127
    %v185 = vpop.permute.xlu0 %184
    %v187 = vadd.f32 %v178, %v185
    %s188 = sld [smem:[#allocation5 + $0x11]]
    %v189 = vstv %s188
    %v190 = vmul.f32 %v54, %v189
    %v192 = vrot.slane %v190, 2
    %193 = vrot.lane.b32.xlu0 %v192, 126
    %v194 = vpop.permute.xlu0 %193
    %v196 = vadd.f32 %v187, %v194
    %s197 = sld [smem:[#allocation6 + $0x1]]
    %v198 = vstv %s197
    %s199 = sld [smem:[#allocation5 + $0x12]]
    %v200 = vstv %s199
    %v201 = vmul.f32 %v53, %v200
    %v202 = vadd.f32 %v198, %v201
    %s203 = sld [smem:[#allocation5 + $0x13]]
    %v204 = vstv %s203
    %v205 = vmul.f32 %v53, %v204
    %207 = vrot.lane.b32.xlu0 %v205, 127
    %v208 = vpop.permute.xlu0 %207
    %v210 = vadd.f32 %v202, %v208
    %s211 = sld [smem:[#allocation5 + $0x14]]
    %v212 = vstv %s211
    %v213 = vmul.f32 %v53, %v212
    %215 = vrot.lane.b32.xlu0 %v213, 126
    %v216 = vpop.permute.xlu0 %215
    %v218 = vadd.f32 %v210, %v216
    %s219 = sld [smem:[#allocation5 + $0x15]]
    %v220 = vstv %s219
    %v221 = vmul.f32 %v53, %v220
    %v223 = vrot.slane %v221, 1
    %v225 = vadd.f32 %v218, %v223
    %s226 = sld [smem:[#allocation5 + $0x16]]
    %v227 = vstv %s226
    %v228 = vmul.f32 %v53, %v227
    %v230 = vrot.slane %v228, 1
    %231 = vrot.lane.b32.xlu0 %v230, 127
    %v232 = vpop.permute.xlu0 %231
    %v234 = vadd.f32 %v225, %v232
    %s235 = sld [smem:[#allocation5 + $0x17]]
    %v236 = vstv %s235
    %v237 = vmul.f32 %v53, %v236
    %v239 = vrot.slane %v237, 1
    %240 = vrot.lane.b32.xlu0 %v239, 126
    %v241 = vpop.permute.xlu0 %240
    %v243 = vadd.f32 %v234, %v241
    %s244 = sld [smem:[#allocation5 + $0x18]]
    %v245 = vstv %s244
    %v246 = vmul.f32 %v53, %v245
    %v248 = vrot.slane %v246, 2
    %v250 = vadd.f32 %v243, %v248
    %s251 = sld [smem:[#allocation5 + $0x19]]
    %v252 = vstv %s251
    %v253 = vmul.f32 %v53, %v252
    %v255 = vrot.slane %v253, 2
    %256 = vrot.lane.b32.xlu0 %v255, 127
    %v257 = vpop.permute.xlu0 %256
    %v259 = vadd.f32 %v250, %v257
    %s260 = sld [smem:[#allocation5 + $0x1a]]
    %v261 = vstv %s260
    %v262 = vmul.f32 %v53, %v261
    %v264 = vrot.slane %v262, 2
    %265 = vrot.lane.b32.xlu0 %v264, 126
    %v266 = vpop.permute.xlu0 %265
    %v268 = vadd.f32 %v259, %v266
    %s269 = sld [smem:[#allocation5 + $0x1b]]
    %v270 = vstv %s269
    %v271 = vmul.f32 %v54, %v270
    %v272 = vadd.f32 %v268, %v271
    %s273 = sld [smem:[#allocation5 + $0x1c]]
    %v274 = vstv %s273
    %v275 = vmul.f32 %v54, %v274
    %277 = vrot.lane.b32.xlu0 %v275, 127
    %v278 = vpop.permute.xlu0 %277
    %v280 = vadd.f32 %v272, %v278
    %s281 = sld [smem:[#allocation5 + $0x1d]]
    %v282 = vstv %s281
    %v283 = vmul.f32 %v54, %v282
    %285 = vrot.lane.b32.xlu0 %v283, 126
    %v286 = vpop.permute.xlu0 %285
    %v288 = vadd.f32 %v280, %v286
    %s289 = sld [smem:[#allocation5 + $0x1e]]
    %v290 = vstv %s289
    %v291 = vmul.f32 %v54, %v290
    %v293 = vrot.slane %v291, 1
    %v295 = vadd.f32 %v288, %v293
    %s296 = sld [smem:[#allocation5 + $0x1f]]
    %v297 = vstv %s296
    %v298 = vmul.f32 %v54, %v297
    %v300 = vrot.slane %v298, 1
    %301 = vrot.lane.b32.xlu0 %v300, 127
    %v302 = vpop.permute.xlu0 %301
    %v304 = vadd.f32 %v295, %v302
    %s305 = sld [smem:[#allocation5 + $0x20]]
    %v306 = vstv %s305
    %v307 = vmul.f32 %v54, %v306
    %v309 = vrot.slane %v307, 1
    %310 = vrot.lane.b32.xlu0 %v309, 126
    %v311 = vpop.permute.xlu0 %310
    %v313 = vadd.f32 %v304, %v311
    %s314 = sld [smem:[#allocation5 + $0x21]]
    %v315 = vstv %s314
    %v316 = vmul.f32 %v54, %v315
    %v318 = vrot.slane %v316, 2
    %v320 = vadd.f32 %v313, %v318
    %s321 = sld [smem:[#allocation5 + $0x22]]
    %v322 = vstv %s321
    %v323 = vmul.f32 %v54, %v322
    %v325 = vrot.slane %v323, 2
    %326 = vrot.lane.b32.xlu0 %v325, 127
    %v327 = vpop.permute.xlu0 %326
    %v329 = vadd.f32 %v320, %v327
    %s330 = sld [smem:[#allocation5 + $0x23]]
    %v331 = vstv %s330
    %v332 = vmul.f32 %v54, %v331
    %v334 = vrot.slane %v332, 2
    %335 = vrot.lane.b32.xlu0 %v334, 126
    %v336 = vpop.permute.xlu0 %335
    %v338 = vadd.f32 %v329, %v336
    %v340 = vrot.slane %v338, 6
    %vm342 = vcmask 1041408
    %v343 = vsel %vm342, %v196, %v340
    %vm344 = vcmask 11264
    %345 = vst.msk [vmem:[%s3] sm:$0xf] %vm344, %v343
    // Predicated region
    $region26: #{tpu_custom_call.1} parent=1 // pred_check
      _
    $region27: #{tpu_custom_call.1} parent=1 // pred_check_branch
      %347 = sbr.rel (0) target = $region29
    $region28: #{tpu_custom_call.1} parent=1 // pred_region
      _
    $region29: #{tpu_custom_call.1} parent=1 // pred_fallthru
      _
    // Predicated region
    $region30: #{tpu_custom_call.1} parent=1 // pred_check
      _
    $region31: #{tpu_custom_call.1} parent=1 // pred_check_branch
      %349 = sbr.rel (0) target = $region33
    $region32: #{tpu_custom_call.1} parent=1 // pred_region
      _
    $region33: #{tpu_custom_call.1} parent=1 // pred_fallthru
      _
    %350 = vsyncpa [#allocation3], 1
    %351 = vsyncpa [#allocation4], 1
    %352 = vsyncpa [#allocation7], 1

</llo_original>
